<compile_context>
chip_gen: v7x
topology: tpu7x:2x2x1
jax: 0.10.0
libtpu: 0.0.40
codegen_flags: <defaults>
</compile_context>

<pallas_src>
import functools

import jax
import jax.numpy as jnp
from jax.experimental import pallas as pl
from jax.experimental.pallas import tpu as pltpu


# --------------------------------------------------------------------------- #
# Kernel
# --------------------------------------------------------------------------- #
def _group_var_partial_kernel(x_ref, o_ref, *, G, MC, n_chunks):
    """Accumulate per-lane partial sums of the within-group variance.

    x_ref: (G*MC, tile_t) input tile; rows are the flattened (batch, channel)
           axis, so group g is the contiguous row block [g*MC, (g+1)*MC).
    o_ref: (MC, 128) float32 per-lane accumulator, resident in VMEM across the
           reduction grid axis (axis 1).
    """
    @pl.when(pl.program_id(1) == 0)
    def _init():
        o_ref[...] = jnp.zeros_like(o_ref)

    inv_g = 1.0 / G

    # Walk the tile in 128-lane chunks: only (MC, 128) temporaries are live,
    # the steady state is vld + VPU adds/mults (DMA-limited), and each lane
    # only ever sums T/128 terms (better accumulation numerics).
    local = jnp.zeros((MC, 128), jnp.float32)
    for j in range(n_chunks):
        lo = j * 128
        # Pass 1: group sum -> mean.
        s = x_ref[0:MC, lo:lo + 128].astype(jnp.float32)
        for g in range(1, G):                       # G is small; unrolled
            s = s + x_ref[g * MC:(g + 1) * MC, lo:lo + 128].astype(jnp.float32)
        mu = s * inv_g
        # Pass 2: centered sum of squares (same formulation as the reference;
        # avoids E[x^2] - mu^2 cancellation). Re-reading the chunk from VMEM
        # is cheap relative to the HBM stream.
        d = x_ref[0:MC, lo:lo + 128].astype(jnp.float32) - mu
        v = d * d
        for g in range(1, G):
            d = x_ref[g * MC:(g + 1) * MC, lo:lo + 128].astype(jnp.float32) - mu
            v = v + d * d
        local = local + v * inv_g
    o_ref[...] = o_ref[...] + local


# --------------------------------------------------------------------------- #
# Wrapper helpers
# --------------------------------------------------------------------------- #
def _vmem_capacity_bytes(default=64 * 1024 * 1024):
    """Best-effort physical VMEM size; conservative 64 MiB (v7x) fallback."""
    try:
        info = pltpu.get_tpu_info()
        for name in ("vmem_capacity_bytes", "vmem_bytes", "vmem_size_bytes"):
            v = getattr(info, name, None)
            if v:
                return int(v)
    except Exception:
        pass
    return default


def _choose_tile_t(t, rows, itemsize, in_budget_bytes, max_tile_t=4096):
    """Largest 128-multiple tile along T whose double-buffered input block fits
    the byte budget. Capped at max_tile_t to bound in-kernel static unrolling
    and at T rounded up to 128 to avoid useless padding."""
    t128 = ((t + 127) // 128) * 128
    by_budget = (in_budget_bytes // (2 * rows * itemsize)) // 128 * 128
    return max(128, min(by_budget, max_tile_t, t128))


# --------------------------------------------------------------------------- #
# Forward
# --------------------------------------------------------------------------- #
def stddev_forward(x, group_size=4, new_feats=1):
    b, c, t = x.shape
    G = min(group_size, b)
    F = new_feats
    assert b % G == 0, "batch must be divisible by group size"
    assert c % F == 0, "channels must be divisible by new_feats"
    M = b // G
    CF = c // F
    MC = M * c                      # rows per group in the flattened view
    rows = b * c

    # --- generation-aware VMEM budgeting ------------------------------------
    vmem_cap = _vmem_capacity_bytes()                       # 64 MiB on v7x, 128 MiB v5e/v6e
    vmem_limit = max(32 * 1024 * 1024,
                     min((vmem_cap * 3) // 4, 128 * 1024 * 1024))
    in_budget = (vmem_cap * 2) // 5                         # ~40% for the input double-buffer
    itemsize = jnp.dtype(x.dtype).itemsize
    tile_t = _choose_tile_t(t, rows, itemsize, in_budget)

    # Flatten (B, C) -> rows for full sublane occupancy (free reshape).
    x2d = x.reshape(rows, t)

    # Zero-pad T up to a tile multiple: a padded column is zero for *every*
    # group member, so mean=0 and (x - mean)^2 = 0 there -> exact no-op on the
    # statistic (which is scaled by the true T below).
    t_pad = pl.cdiv(t, tile_t) * tile_t
    if t_pad != t:
        x2d = jnp.pad(x2d, ((0, 0), (0, t_pad - t)))

    t_tiles = t_pad // tile_t
    # Leading "parallel" axis: lets v7x's two TensorCores each reduce half of T
    # (harmless extra outer iteration on single-TC v5e/v6e).
    n_split = 2 if (t_tiles >= 2 and t_tiles % 2 == 0) else 1
    tps = t_tiles // n_split

    kernel = functools.partial(_group_var_partial_kernel,
                               G=G, MC=MC, n_chunks=tile_t // 128)

    partials = pl.pallas_call(
        kernel,
        grid=(n_split, tps),
        in_specs=[pl.BlockSpec((rows, tile_t),
                               lambda p, i: (0, p * tps + i))],
        # Output block index is constant across the (reduction) grid axis 1, so
        # each split's (MC, 128) f32 block stays resident and accumulates.
        out_specs=pl.BlockSpec((None, MC, 128), lambda p, i: (p, 0, 0)),
        out_shape=jax.ShapeDtypeStruct((n_split, MC, 128), jnp.float32),
        compiler_params=pltpu.CompilerParams(
            dimension_semantics=("parallel", "arbitrary"),
            vmem_limit_bytes=int(vmem_limit)),
    )(x2d)

    # Tiny finalize in the wrapper: fold splits + lanes, reduce over C//F,
    # scale by 1/(CF*T) and add the reference's 1e-08 ** 0.5 (= 1e-4).
    lane_sums = jnp.sum(partials, axis=(0, 2))               # (M*C,)
    stat = jnp.sum(lane_sums.reshape(M, F, CF), axis=2)      # (M, F)
    stat = stat * (1.0 / (CF * t)) + 1e-08 ** 0.5

    # Broadcast over group & time + concat with x left to XLA (layout plumbing).
    # TODO(synk): fusing the x pass-through copy into the kernel would save one
    # HBM pass, but writing only the F stat rows needs an unaligned channel
    # block (F < 8); kept in XLA for robustness.
    y = jnp.broadcast_to(stat.astype(x.dtype)[None, :, :, None], (G, M, F, t))
    y = y.reshape(b, F, t)
    return jnp.concatenate([x, y], axis=1)


# --------------------------------------------------------------------------- #
# Pure-JAX reference (mirror of the PyTorch forward, for verification)
# --------------------------------------------------------------------------- #
def _reference(x, group_size=4, new_feats=1):
    b, c, t = x.shape
    G = min(group_size, b)
    y = x.reshape(G, -1, new_feats, c // new_feats, t)
    y = y - jnp.mean(y, axis=0, keepdims=True)
    y = jnp.mean(y ** 2, axis=0, keepdims=True)
    y = y + 1e-08 ** 0.5
    y = jnp.mean(y, axis=(3, 4), keepdims=True)               # (1, M, F, 1, 1)
    y = jnp.broadcast_to(y, (G, y.shape[1], new_feats, 1, t))
    y = y.reshape(b, new_feats, t)
    return jnp.concatenate([x, y], axis=1)


if __name__ == "__main__":
    fwd = jax.jit(stddev_forward, static_argnames=("group_size", "new_feats"))

    # Small case: single tile, grid=(1, 1), T padded 16 -> 128.
    B, C, T = 8, 4, 16                    # group_size=4 -> G=4, M=2, F=1
    x = jax.random.normal(jax.random.PRNGKey(0), (B, C, T), dtype=jnp.float32)
    z = jax.block_until_ready(fwd(x, group_size=4, new_feats=1))
    z_ref = _reference(x, group_size=4, new_feats=1)
    assert z.shape == (B, C + 1, T), z.shape
    assert jnp.allclose(z, z_ref, atol=2e-5, rtol=1e-5), "mismatch (small)"

    # Multi-tile + parallel-split path: T=16384 -> tile_t=4096, grid=(2, 2).
    T2 = 16384
    x2 = jax.random.normal(jax.random.PRNGKey(1), (B, C, T2), dtype=jnp.float32)
    z2 = jax.block_until_ready(fwd(x2, group_size=4, new_feats=1))
    z2_ref = _reference(x2, group_size=4, new_feats=1)
    assert z2.shape == (B, C + 1, T2), z2.shape
    assert jnp.allclose(z2, z2_ref, atol=2e-5, rtol=1e-5), "mismatch (tiled)"

    # Non-divisible T (zero-padding path) and new_feats=2.
    T3 = 1000
    x3 = jax.random.normal(jax.random.PRNGKey(2), (B, C, T3), dtype=jnp.float32)
    z3 = jax.block_until_ready(fwd(x3, group_size=4, new_feats=2))
    z3_ref = _reference(x3, group_size=4, new_feats=2)
    assert z3.shape == (B, C + 2, T3), z3.shape
    assert jnp.allclose(z3, z3_ref, atol=2e-5, rtol=1e-5), "mismatch (padded/F=2)"

    print("KERNEL_OK")
</pallas_src>

<mosaic_0001>
module attributes {stable_mosaic.version = 11 : i64} {
  func.func @_group_var_partial_kernel(%arg0: i32, %arg1: i32, %arg2: memref<32x128xf32, #tpu.memory_space<vmem>>, %arg3: memref<1x8x128xf32, #tpu.memory_space<vmem>>) attributes {dimension_semantics = [#tpu.dimension_semantics<parallel>, #tpu.dimension_semantics<arbitrary>], iteration_bounds = array<i64: 1, 1>, scalar_prefetch = 0 : i64, scratch_operands = 0 : i64, tpu.core_type = #tpu.core_type<tc>, window_params = [{transform_indices = @transform_0, window_bounds = array<i64: 32, 128>}, {transform_indices = @transform_1, window_bounds = array<i64: 1, 8, 128>}]} {
    %c0_i32 = arith.constant 0 : i32
    %0 = arith.cmpi eq, %arg1, %c0_i32 : i32
    %1 = arith.extui %0 : i1 to i32
    %c0_i32_0 = arith.constant 0 : i32
    %2 = arith.cmpi ne, %1, %c0_i32_0 : i32
    scf.if %2 {
      %cst_21 = arith.constant 0.000000e+00 : f32
      %37 = vector.broadcast %cst_21 : f32 to vector<8x128xf32>
      %c0_22 = arith.constant 0 : index
      %c0_23 = arith.constant 0 : index
      %c0_24 = arith.constant 0 : index
      %38 = vector.load %arg3[%c0_22, %c0_23, %c0_24] : memref<1x8x128xf32, #tpu.memory_space<vmem>>, vector<1x8x128xf32>
      %39 = vector.shape_cast %38 : vector<1x8x128xf32> to vector<8x128xf32>
      %40 = vector.shape_cast %37 : vector<8x128xf32> to vector<1x8x128xf32>
      tpu.vector_store %arg3[%c0_22, %c0_23, %c0_24], %40 {strides = array<i32>} : memref<1x8x128xf32, #tpu.memory_space<vmem>>, vector<1x8x128xf32>,
    } else {
    }
    %cst = arith.constant 0.000000e+00 : f32
    %3 = vector.broadcast %cst : f32 to vector<8x128xf32>
    %c0 = arith.constant 0 : index
    %c0_1 = arith.constant 0 : index
    %4 = vector.load %arg2[%c0, %c0_1] : memref<32x128xf32, #tpu.memory_space<vmem>>, vector<8x128xf32>
    %c8 = arith.constant 8 : index
    %c0_2 = arith.constant 0 : index
    %5 = vector.load %arg2[%c8, %c0_2] : memref<32x128xf32, #tpu.memory_space<vmem>>, vector<8x128xf32>
    %6 = arith.addf %4, %5 : vector<8x128xf32>
    %c16 = arith.constant 16 : index
    %c0_3 = arith.constant 0 : index
    %7 = vector.load %arg2[%c16, %c0_3] : memref<32x128xf32, #tpu.memory_space<vmem>>, vector<8x128xf32>
    %8 = arith.addf %6, %7 : vector<8x128xf32>
    %c24 = arith.constant 24 : index
    %c0_4 = arith.constant 0 : index
    %9 = vector.load %arg2[%c24, %c0_4] : memref<32x128xf32, #tpu.memory_space<vmem>>, vector<8x128xf32>
    %10 = arith.addf %8, %9 : vector<8x128xf32>
    %cst_5 = arith.constant 2.500000e-01 : f32
    %11 = vector.broadcast %cst_5 : f32 to vector<8x128xf32>
    %12 = arith.mulf %10, %11 : vector<8x128xf32>
    %c0_6 = arith.constant 0 : index
    %c0_7 = arith.constant 0 : index
    %13 = vector.load %arg2[%c0_6, %c0_7] : memref<32x128xf32, #tpu.memory_space<vmem>>, vector<8x128xf32>
    %14 = arith.subf %13, %12 : vector<8x128xf32>
    %15 = arith.mulf %14, %14 : vector<8x128xf32>
    %c8_8 = arith.constant 8 : index
    %c0_9 = arith.constant 0 : index
    %16 = vector.load %arg2[%c8_8, %c0_9] : memref<32x128xf32, #tpu.memory_space<vmem>>, vector<8x128xf32>
    %17 = arith.subf %16, %12 : vector<8x128xf32>
    %18 = arith.mulf %17, %17 : vector<8x128xf32>
    %19 = arith.addf %15, %18 : vector<8x128xf32>
    %c16_10 = arith.constant 16 : index
    %c0_11 = arith.constant 0 : index
    %20 = vector.load %arg2[%c16_10, %c0_11] : memref<32x128xf32, #tpu.memory_space<vmem>>, vector<8x128xf32>
    %21 = arith.subf %20, %12 : vector<8x128xf32>
    %22 = arith.mulf %21, %21 : vector<8x128xf32>
    %23 = arith.addf %19, %22 : vector<8x128xf32>
    %c24_12 = arith.constant 24 : index
    %c0_13 = arith.constant 0 : index
    %24 = vector.load %arg2[%c24_12, %c0_13] : memref<32x128xf32, #tpu.memory_space<vmem>>, vector<8x128xf32>
    %25 = arith.subf %24, %12 : vector<8x128xf32>
    %26 = arith.mulf %25, %25 : vector<8x128xf32>
    %27 = arith.addf %23, %26 : vector<8x128xf32>
    %cst_14 = arith.constant 2.500000e-01 : f32
    %28 = vector.broadcast %cst_14 : f32 to vector<8x128xf32>
    %29 = arith.mulf %27, %28 : vector<8x128xf32>
    %30 = arith.addf %3, %29 : vector<8x128xf32>
    %c0_15 = arith.constant 0 : index
    %c0_16 = arith.constant 0 : index
    %c0_17 = arith.constant 0 : index
    %31 = vector.load %arg3[%c0_15, %c0_16, %c0_17] : memref<1x8x128xf32, #tpu.memory_space<vmem>>, vector<1x8x128xf32>
    %32 = vector.shape_cast %31 : vector<1x8x128xf32> to vector<8x128xf32>
    %33 = arith.addf %32, %30 : vector<8x128xf32>
    %c0_18 = arith.constant 0 : index
    %c0_19 = arith.constant 0 : index
    %c0_20 = arith.constant 0 : index
    %34 = vector.load %arg3[%c0_18, %c0_19, %c0_20] : memref<1x8x128xf32, #tpu.memory_space<vmem>>, vector<1x8x128xf32>
    %35 = vector.shape_cast %34 : vector<1x8x128xf32> to vector<8x128xf32>
    %36 = vector.shape_cast %33 : vector<8x128xf32> to vector<1x8x128xf32>
    tpu.vector_store %arg3[%c0_18, %c0_19, %c0_20], %36 {strides = array<i32>} : memref<1x8x128xf32, #tpu.memory_space<vmem>>, vector<1x8x128xf32>,
    return
  }
  func.func @transform_0(%arg0: i32, %arg1: i32) -> (i32, i32) {
    %c1_i32 = arith.constant 1 : i32
    %0 = arith.muli %arg0, %c1_i32 : i32
    %1 = arith.addi %0, %arg1 : i32
    %c0_i32 = arith.constant 0 : i32
    %c0_i32_0 = arith.constant 0 : i32
    return %c0_i32, %1 : i32, i32
  }
  func.func @transform_1(%arg0: i32, %arg1: i32) -> (i32, i32, i32) {
    %c0_i32 = arith.constant 0 : i32
    %c0_i32_0 = arith.constant 0 : i32
    %c0_i32_1 = arith.constant 0 : i32
    return %arg0, %c0_i32, %c0_i32_0 : i32, i32, i32
  }
}

</mosaic_0001>

<llo_original>
// kernel: stddev_forward.1
$region0: #{stddev_forward.1}
  #allocation0 [shape = 'u32[]', space=smem, size = 0x4, offset = 0x4, fixed_abs, tag = 'smem constant byte address 0x4 - core index']
  #allocation1 [shape = 'u32[144,128]{1,0:T(1,128)}', space=vmem, size = 0x12000, scoped, tag = 'internal scratch']
  %s0 = inlined_call_operand.vmem [shape: f32[32,128], index: 0, kind: input, shape index: {}]
  %s1 = inlined_call_operand.vmem [shape: f32[1,8,128], index: 1, kind: output, shape index: {}]
  %s2 = sld [smem:[#allocation0]]
  $region18: #{stddev_forward.1} parent=0
    _
  %s4 = ssub.s32 1, %s2
  %s5 = scalar_select 0, %s4, %s2
  // Predicated region
  $region2: #{stddev_forward.1} parent=0 // pred_check
    _
  $region3: #{stddev_forward.1} parent=0 // pred_check_branch
    %7 = sbr.rel (0) target = $region5
  $region4: #{stddev_forward.1} parent=0 // pred_region
    %s8 = sadd.s32 0, 0
    %p9 = scmp.lt.s32.totalorder %s8, 0
    %s10 = scalar_select %p9, %s8, 0
    %s11 = smul.addr %s10, 8
    %s12 = scalar_lea.vmem %s0, %s11
    %s13 = sadd.s32 0, 0
  $region5: #{stddev_forward.1} parent=0 // pred_fallthru
    _
  %s14 = sadd.s32 0, 0
  %p15 = scmp.lt.s32.totalorder %s14, 0
  %s16 = scalar_select %p15, %s14, 0
  %s17 = smul.addr %s16, 8
  %s18 = scalar_lea.vmem %s0, %s17
  %s19 = sadd.s32 0, 0
  %p20 = scmp.lt.s32.totalorder %s19, 0
  %s21 = scalar_select %p20, %s19, 0
  %s22 = smul.addr %s21, 8
  %s23 = scalar_lea.vmem %s0, %s22
  %s24 = sadd.s32 0, 0
  %p25 = scmp.eq.s32.totalorder 0, 0
  // Predicated region
  $region6: #{stddev_forward.1} parent=0 // pred_check
    %p26 = pneg %p25
  $region7: #{stddev_forward.1} parent=0 // pred_check_branch
    %28 = sbr.rel (%p26) target = $region9
  $region8: #{stddev_forward.1} parent=0 // pred_region
    %29 = vst [vmem:[%s1] sm:$0xff] 0.0
  $region9: #{stddev_forward.1} parent=0 // pred_fallthru
    _
  %v30 = vld [vmem:[%s23] sm:$0xff]
  %v31 = vld [vmem:[%s23 + $0x8] sm:$0xff]
  %v32 = vadd.f32 %v30, %v31
  %v33 = vld [vmem:[%s23 + $0x10] sm:$0xff]
  %v34 = vadd.f32 %v32, %v33
  %v35 = vld [vmem:[%s23 + $0x18] sm:$0xff]
  %v36 = vadd.f32 %v34, %v35
  %v37 = vmul.f32 %v36, 0.25
  %v38 = vsub.f32 %v30, %v37
  %v39 = vmul.f32 %v38, %v38
  %v40 = vsub.f32 %v31, %v37
  %v41 = vmul.f32 %v40, %v40
  %v42 = vadd.f32 %v39, %v41
  %v43 = vsub.f32 %v33, %v37
  %v44 = vmul.f32 %v43, %v43
  %v45 = vadd.f32 %v42, %v44
  %v46 = vsub.f32 %v35, %v37
  %v47 = vmul.f32 %v46, %v46
  %v48 = vadd.f32 %v45, %v47
  %v49 = vmul.f32 %v48, 0.25
  %v50 = vadd.f32 %v49, 0.0
  %v51 = vld [vmem:[%s1] sm:$0xff]
  %v52 = vadd.f32 %v51, %v50
  %53 = vst [vmem:[%s1] sm:$0xff] %v52
  // Predicated region
  $region10: #{stddev_forward.1} parent=0 // pred_check
    _
  $region11: #{stddev_forward.1} parent=0 // pred_check_branch
    %55 = sbr.rel (0) target = $region13
  $region12: #{stddev_forward.1} parent=0 // pred_region
    _
  $region13: #{stddev_forward.1} parent=0 // pred_fallthru
    _
  // Predicated region
  $region14: #{stddev_forward.1} parent=0 // pred_check
    _
  $region15: #{stddev_forward.1} parent=0 // pred_check_branch
    %57 = sbr.rel (0) target = $region17
  $region16: #{stddev_forward.1} parent=0 // pred_region
    _
  $region17: #{stddev_forward.1} parent=0 // pred_fallthru
    _

</llo_original>
